<compile_context>
chip_gen: v7x
topology: tpu7x:2x2x1
jax: 0.10.0
libtpu: 0.0.40
codegen_flags: <defaults>
</compile_context>

<pallas_src>
import math
from functools import partial

import jax
import jax.numpy as jnp
import numpy as np
from jax.experimental import pallas as pl
from jax.experimental.pallas import tpu as pltpu


def _round_up(a, b):
    return ((a + b - 1) // b) * b


def _vmem_capacity_bytes(default=64 * 1024 * 1024):
    """Per-generation VMEM capacity (v5e/v6e 128 MiB, v7x 64 MiB); safe fallback."""
    try:
        info = pltpu.get_tpu_info()
        cap = int(getattr(info, "vmem_capacity_bytes", 0))
        if cap > 0:
            return cap
    except Exception:
        pass
    return default


def _pick_l_tile(l_need_frames, c_in, c_out, s, m, cr, l_tile_max, budget_bytes):
    """Largest multiple-of-16 frame tile whose working set fits the VMEM budget."""
    sco = s * c_out
    # Per input-frame bytes: double-buffered x / out blocks + matmul operand/result.
    per_frame = (2 * c_in * 2 + 2 * sco * 4) + (m * c_in * 2 + 2 * sco * 4)
    # Fixed charges: resident (double-buffered) packed weight + bias, carry scratch, headroom.
    fixed = 2 * (m * c_in * sco * 2) + 2 * (sco * 4) + max(cr, 8) * c_in * 2 + (1 << 20)
    lt = (budget_bytes - fixed) // max(per_frame, 1)
    lt = min(int(lt), int(l_tile_max), _round_up(l_need_frames, 16))
    lt = max(lt, 16, _round_up(max(cr, 1), 16))
    return (lt // 16) * 16


def _make_kernel(Lt, C_in, SCo, M, CR):
    """One lane-dense MXU matmul per tile; overlap-add folded into the contraction."""

    if M == 1:  # kernel_size <= stride: no cross-tile history needed.
        def kernel(x_ref, w_ref, b_ref, o_ref):
            y = jnp.dot(x_ref[0], w_ref[...], preferred_element_type=jnp.float32)
            o_ref[0] = (y + b_ref[...]).astype(o_ref.dtype)
        return kernel

    def kernel(x_ref, w_ref, b_ref, o_ref, carry_ref):
        # carry_ref holds the last CR input frames of the previous tile
        # (zeros before the first tile == x[j < 0] contributes nothing).
        @pl.when(pl.program_id(1) == 0)
        def _init():
            carry_ref[...] = jnp.zeros_like(carry_ref)

        x_curr = x_ref[0]                                           # (Lt, C_in) bf16
        x_full = jnp.concatenate([carry_ref[0], x_curr], axis=0)    # (CR + Lt, C_in)
        # Column block m of Xcat is x shifted back by m frames: Xcat[q, m*C_in+ci] = x[q-m, ci].
        parts = [x_curr] + [x_full[CR - m:CR - m + Lt, :] for m in range(1, M)]
        x_cat = jnp.concatenate(parts, axis=1)                      # (Lt, M*C_in)
        y = jnp.dot(x_cat, w_ref[...], preferred_element_type=jnp.float32)  # (Lt, S*C_out)
        o_ref[0] = (y + b_ref[...]).astype(o_ref.dtype)
        carry_ref[0] = x_full[Lt:Lt + CR, :]                        # history for the next tile

    return kernel


@partial(jax.jit, static_argnames=("stride", "causal", "trim_right_ratio",
                                   "l_tile_max", "channels_last_out"))
def sconv_transpose1d(x_ncl, weight, bias, stride, causal=False,
                      trim_right_ratio=1.0, l_tile_max=1024,
                      channels_last_out=False):
    """Forward pass of SConvTranspose1d (norm='none').

    x_ncl:  (N, C_in, L_in)  float32   (PyTorch NCW layout)
    weight: (C_in, C_out, K) float32   (PyTorch ConvTranspose1d weight layout)
    bias:   (C_out,)         float32
    Returns (N, C_out, L_in*stride), or (N, L_in*stride, C_out) when
    channels_last_out=True (skips the final NCW transpose).
    """
    N, C_in, L_in = x_ncl.shape
    C_in_w, C_out, K = weight.shape
    assert C_in_w == C_in
    S = int(stride)
    assert K >= S, "kernel_size < stride not supported (unpad1d would assert)"
    assert causal or trim_right_ratio == 1.0

    M = -(-K // S)                       # taps per output phase
    CR = _round_up(M - 1, 8)             # carried history frames (0 if M == 1)
    SCo = S * C_out
    Kpad = M * S

    padding_total = K - S
    if causal:
        padding_right = math.ceil(padding_total * trim_right_ratio)
    else:
        padding_right = padding_total // 2
    padding_left = padding_total - padding_right
    L_final = L_in * S

    # ---- pack weight: Wcat[m*C_in + ci, r*C_out + co] = W[ci, co, m*S + r] (0 past K)
    w_p = weight
    if Kpad > K:
        w_p = jnp.pad(weight, ((0, 0), (0, 0), (0, Kpad - K)))
    w_cat = (w_p.reshape(C_in, C_out, M, S)
                .transpose(2, 0, 3, 1)
                .reshape(M * C_in, SCo)
                .astype(jnp.bfloat16))
    b_cat = jnp.tile(bias.astype(jnp.float32), S).reshape(1, SCo)

    # ---- frame-axis tiling sized against this generation's VMEM
    vmem_cap = _vmem_capacity_bytes()
    L_need = L_in + M - 1                 # frames needed to cover the right edge
    Lt = _pick_l_tile(L_need, C_in, C_out, S, M, CR, l_tile_max,
                      budget_bytes=int(vmem_cap * 0.45))
    num_tiles = pl.cdiv(L_need, Lt)
    L_padF = num_tiles * Lt

    # channels-last, bf16; zero-padded frames past L_in are exactly the "no
    # contribution" rows the transposed conv needs at the right edge.
    # TODO(synk): the pad is a small extra pass over x (x is ~S*C_out/C_in x
    # smaller than the output); a masked last tile would remove it entirely.
    x_nlc = jnp.transpose(x_ncl, (0, 2, 1)).astype(jnp.bfloat16)
    if L_padF > L_in:
        x_nlc = jnp.pad(x_nlc, ((0, 0), (0, L_padF - L_in), (0, 0)))

    kernel = _make_kernel(Lt, C_in, SCo, M, CR)
    scratch = [] if M == 1 else [pltpu.VMEM((1, CR, C_in), jnp.bfloat16)]

    cost = pl.CostEstimate(
        flops=2 * N * L_padF * (M * C_in) * SCo,
        transcendentals=0,
        bytes_accessed=(N * L_padF * C_in * 2 + M * C_in * SCo * 2
                        + SCo * 4 + N * L_padF * SCo * 4),
    )

    y_frames = pl.pallas_call(
        kernel,
        out_shape=jax.ShapeDtypeStruct((N, L_padF, SCo), jnp.float32),
        grid_spec=pltpu.PrefetchScalarGridSpec(
            num_scalar_prefetch=0,
            grid=(N, num_tiles),
            in_specs=[
                pl.BlockSpec((1, Lt, C_in), lambda n, i: (n, i, 0)),
                pl.BlockSpec((M * C_in, SCo), lambda n, i: (0, 0)),
                pl.BlockSpec((1, SCo), lambda n, i: (0, 0)),
            ],
            out_specs=pl.BlockSpec((1, Lt, SCo), lambda n, i: (n, i, 0)),
            scratch_shapes=scratch,
        ),
        compiler_params=pltpu.CompilerParams(
            # batch axis parallel (megacore on v7x); frame axis carries the
            # input-history scratch -> must stay sequential ('arbitrary').
            dimension_semantics=("parallel", "arbitrary"),
            vmem_limit_bytes=int(min(vmem_cap * 0.9, 128 * 1024 * 1024)),
        ),
        cost_estimate=cost,
    )(x_nlc, w_cat, b_cat)

    # frames -> rows is a free row-major reshape; a single fused slice
    # (+ optional transpose) applies the left trim and returns to NCW.
    y_rows = y_frames.reshape(N, L_padF * S, C_out)
    y = y_rows[:, padding_left:padding_left + L_final, :]
    if channels_last_out:
        return y
    return jnp.transpose(y, (0, 2, 1))


def _reference_sconv_transpose1d(x_ncl, weight, bias, stride, causal=False,
                                 trim_right_ratio=1.0):
    """Pure-JAX reference (direct definition of ConvTranspose1d + unpad1d)."""
    N, C_in, L_in = x_ncl.shape
    _, C_out, K = weight.shape
    S = int(stride)
    L_out = (L_in - 1) * S + K
    y = jnp.zeros((N, C_out, L_out), jnp.float32) + bias[None, :, None]
    for j in range(L_in):
        for k in range(K):
            y = y.at[:, :, j * S + k].add(
                jnp.einsum("ni,io->no", x_ncl[:, :, j], weight[:, :, k])
            )
    padding_total = K - S
    if causal:
        padding_right = math.ceil(padding_total * trim_right_ratio)
    else:
        padding_right = padding_total // 2
    padding_left = padding_total - padding_right
    return y[:, :, padding_left:L_out - padding_right]


if __name__ == "__main__":
    # SEANet-style upsampler config (kernel_size = 2 * stride), small test shapes.
    in_channels, out_channels = 8, 16
    kernel_size, stride = 8, 4
    causal = False
    trim_right_ratio = 1.0

    N, L_in = 2, 16
    key = jax.random.PRNGKey(0)
    kx, kw, kb = jax.random.split(key, 3)
    x = jax.random.normal(kx, (N, in_channels, L_in), dtype=jnp.float32)
    fan = in_channels * kernel_size
    bound = 1.0 / math.sqrt(fan)
    weight = jax.random.uniform(kw, (in_channels, out_channels, kernel_size),
                                minval=-bound, maxval=bound, dtype=jnp.float32)
    bias = jax.random.uniform(kb, (out_channels,), minval=-bound, maxval=bound,
                              dtype=jnp.float32)

    y = sconv_transpose1d(x, weight, bias, stride=stride, causal=causal,
                          trim_right_ratio=trim_right_ratio)
    y = jax.block_until_ready(y)

    # Reference on the same bf16-rounded matmul inputs (the kernel feeds bf16 to
    # the MXU and accumulates in f32), so the comparison can stay tight.
    x_r = x.astype(jnp.bfloat16).astype(jnp.float32)
    w_r = weight.astype(jnp.bfloat16).astype(jnp.float32)
    y_ref = _reference_sconv_transpose1d(x_r, w_r, bias, stride, causal=causal,
                                         trim_right_ratio=trim_right_ratio)

    assert y.shape == (N, out_channels, L_in * stride), y.shape
    np.testing.assert_allclose(np.asarray(y), np.asarray(y_ref),
                               rtol=1e-4, atol=1e-4)
    print("KERNEL_OK")
</pallas_src>

<mosaic_0001>
module attributes {stable_mosaic.version = 11 : i64} {
  func.func @kernel(%arg0: i32, %arg1: i32, %arg2: memref<1x32x8xbf16, #tpu.memory_space<vmem>>, %arg3: memref<16x64xbf16, #tpu.memory_space<vmem>>, %arg4: memref<1x64xf32, #tpu.memory_space<vmem>>, %arg5: memref<1x32x64xf32, #tpu.memory_space<vmem>>, %arg6: memref<1x8x8xbf16, #tpu.memory_space<vmem>>) attributes {dimension_semantics = [#tpu.dimension_semantics<parallel>, #tpu.dimension_semantics<arbitrary>], iteration_bounds = array<i64: 2, 1>, scalar_prefetch = 0 : i64, scratch_operands = 1 : i64, tpu.core_type = #tpu.core_type<tc>, window_params = [{transform_indices = @transform_0, window_bounds = array<i64: 1, 32, 8>}, {pipeline_mode = #tpu.pipeline_mode<synchronous>, transform_indices = @transform_1, window_bounds = array<i64: 16, 64>}, {pipeline_mode = #tpu.pipeline_mode<synchronous>, transform_indices = @transform_2, window_bounds = array<i64: 1, 64>}, {transform_indices = @transform_3, window_bounds = array<i64: 1, 32, 64>}]} {
    %c0_i32 = arith.constant 0 : i32
    %0 = arith.cmpi eq, %arg1, %c0_i32 : i32
    %1 = arith.extui %0 : i1 to i32
    %c0_i32_0 = arith.constant 0 : i32
    %2 = arith.cmpi ne, %1, %c0_i32_0 : i32
    scf.if %2 {
      %cst_16 = arith.constant 0.000000e+00 : bf16
      %22 = vector.broadcast %cst_16 : bf16 to vector<1x8x8xbf16>
      %c0_17 = arith.constant 0 : index
      %c0_18 = arith.constant 0 : index
      %c0_19 = arith.constant 0 : index
      %23 = vector.load %arg6[%c0_17, %c0_18, %c0_19] : memref<1x8x8xbf16, #tpu.memory_space<vmem>>, vector<1x8x8xbf16>
      tpu.vector_store %arg6[%c0_17, %c0_18, %c0_19], %22 {strides = array<i32>} : memref<1x8x8xbf16, #tpu.memory_space<vmem>>, vector<1x8x8xbf16>,
    } else {
    }
    %c0 = arith.constant 0 : index
    %c0_1 = arith.constant 0 : index
    %c0_2 = arith.constant 0 : index
    %3 = vector.load %arg2[%c0, %c0_1, %c0_2] : memref<1x32x8xbf16, #tpu.memory_space<vmem>>, vector<1x32x8xbf16>
    %4 = vector.shape_cast %3 : vector<1x32x8xbf16> to vector<32x8xbf16>
    %c0_3 = arith.constant 0 : index
    %c0_4 = arith.constant 0 : index
    %c0_5 = arith.constant 0 : index
    %5 = vector.load %arg6[%c0_3, %c0_4, %c0_5] : memref<1x8x8xbf16, #tpu.memory_space<vmem>>, vector<1x8x8xbf16>
    %6 = vector.shape_cast %5 : vector<1x8x8xbf16> to vector<8x8xbf16>
    %7 = tpu.concatenate %6, %4 in 0 : vector<8x8xbf16>, vector<32x8xbf16> -> vector<40x8xbf16>
    %8 = vector.extract_strided_slice %7 {offsets = [7, 0], sizes = [32, 8], strides = [1, 1]} : vector<40x8xbf16> to vector<32x8xbf16>
    %9 = tpu.concatenate %4, %8 in 1 : vector<32x8xbf16>, vector<32x8xbf16> -> vector<32x16xbf16>
    %c0_6 = arith.constant 0 : index
    %c0_7 = arith.constant 0 : index
    %10 = vector.load %arg3[%c0_6, %c0_7] : memref<16x64xbf16, #tpu.memory_space<vmem>>, vector<16x64xbf16>
    %cst = arith.constant dense<0.000000e+00> : vector<32x64xf32>
    %11 = tpu.matmul %9, %10, %cst {dimension_numbers = #tpu.dot_dimension_numbers<[1], [0], [0], [1], [0, 0, 1, 1], [], []>} : vector<32x16xbf16>, vector<16x64xbf16>, vector<32x64xf32> -> vector<32x64xf32>
    %c0_8 = arith.constant 0 : index
    %c0_9 = arith.constant 0 : index
    %12 = vector.load %arg4[%c0_8, %c0_9] : memref<1x64xf32, #tpu.memory_space<vmem>>, vector<1x64xf32>
    %13 = vector.broadcast %12 : vector<1x64xf32> to vector<32x64xf32>
    %14 = arith.addf %11, %13 : vector<32x64xf32>
    %c0_10 = arith.constant 0 : index
    %c0_11 = arith.constant 0 : index
    %c0_12 = arith.constant 0 : index
    %15 = vector.load %arg5[%c0_10, %c0_11, %c0_12] : memref<1x32x64xf32, #tpu.memory_space<vmem>>, vector<1x32x64xf32>
    %16 = vector.shape_cast %15 : vector<1x32x64xf32> to vector<32x64xf32>
    %17 = vector.shape_cast %14 : vector<32x64xf32> to vector<1x32x64xf32>
    tpu.vector_store %arg5[%c0_10, %c0_11, %c0_12], %17 {strides = array<i32>} : memref<1x32x64xf32, #tpu.memory_space<vmem>>, vector<1x32x64xf32>,
    %18 = vector.extract_strided_slice %7 {offsets = [32, 0], sizes = [8, 8], strides = [1, 1]} : vector<40x8xbf16> to vector<8x8xbf16>
    %c0_13 = arith.constant 0 : index
    %c0_14 = arith.constant 0 : index
    %c0_15 = arith.constant 0 : index
    %19 = vector.load %arg6[%c0_13, %c0_14, %c0_15] : memref<1x8x8xbf16, #tpu.memory_space<vmem>>, vector<1x8x8xbf16>
    %20 = vector.shape_cast %19 : vector<1x8x8xbf16> to vector<8x8xbf16>
    %21 = vector.shape_cast %18 : vector<8x8xbf16> to vector<1x8x8xbf16>
    tpu.vector_store %arg6[%c0_13, %c0_14, %c0_15], %21 {strides = array<i32>} : memref<1x8x8xbf16, #tpu.memory_space<vmem>>, vector<1x8x8xbf16>,
    return
  }
  func.func @transform_0(%arg0: i32, %arg1: i32) -> (i32, i32, i32) {
    %c0_i32 = arith.constant 0 : i32
    %c0_i32_0 = arith.constant 0 : i32
    return %arg0, %arg1, %c0_i32 : i32, i32, i32
  }
  func.func @transform_1(%arg0: i32, %arg1: i32) -> (i32, i32) {
    %c0_i32 = arith.constant 0 : i32
    %c0_i32_0 = arith.constant 0 : i32
    %c0_i32_1 = arith.constant 0 : i32
    return %c0_i32, %c0_i32_0 : i32, i32
  }
  func.func @transform_2(%arg0: i32, %arg1: i32) -> (i32, i32) {
    %c0_i32 = arith.constant 0 : i32
    %c0_i32_0 = arith.constant 0 : i32
    %c0_i32_1 = arith.constant 0 : i32
    return %c0_i32, %c0_i32_0 : i32, i32
  }
  func.func @transform_3(%arg0: i32, %arg1: i32) -> (i32, i32, i32) {
    %c0_i32 = arith.constant 0 : i32
    %c0_i32_0 = arith.constant 0 : i32
    return %arg0, %arg1, %c0_i32 : i32, i32, i32
  }
}

</mosaic_0001>

<llo_original>
// kernel: tile.8
$region0: #{tile.8}
  #allocation0 [shape = 's32[1]{0}', space=sflag, size = 0x4, scoped, tag = 'scoped memory for tile.8']
  %s0 = inlined_call_operand.vmem [shape: f32[16], index: 0, kind: input, shape index: {}]
  %s1 = inlined_call_operand.vmem [shape: f32[4,16], index: 1, kind: output, shape index: {}]
  // Predicated region
  $region2: #{tile.8} parent=0 // pred_check
    _
  $region3: #{tile.8} parent=0 // pred_check_branch
    %3 = sbr.rel (0) target = $region5
  $region4: #{tile.8} parent=0 // pred_region
    _
  $region5: #{tile.8} parent=0 // pred_fallthru
    _
  %v4 = vld [vmem:[%s0] ss:$0 sm:$0xff]
  %5 = vst [vmem:[%s1] sm:$0xf] %v4

// kernel: tile.9
$region0: #{tile.9}
  %s0 = inlined_call_operand.vmem [shape: f32[4,16], index: 0, kind: input, shape index: {}]
  %s1 = inlined_call_operand.vmem [shape: f32[1,64], index: 1, kind: output, shape index: {}]
  $region1: #{tile.9} parent=0
    #allocation0 [shape = 'u8[4096]{0}', space=vmem, size = 0x1000, scoped, tag = 'scoped mem for output reshape']
    #allocation1 [shape = 'u8[4096]{0}', space=vmem, size = 0x1000, scoped, tag = 'scoped mem for input reshape']
    %s3 = sshllo.u32 0, 4
    %v4 = vld [vmem:[%s0] sm:%s3]
    %5 = vst [vmem:[#allocation1] sm:%s3] %v4
    %v6 = vld [vmem:[#allocation1] sm:$0x1]
    %vm7 = vcmask 130048
    %8 = vst.msk [vmem:[#allocation0] sm:$0x1] %vm7, %v6
    %s9 = scalar_lea.vmem [#allocation1], 3
    %v10 = vld [vmem:[%s9] sm:$0x1]
    %11 = vrot.lane.b32.xlu0 %v10, 48
    %v12 = vpop.permute.xlu0 %11
    %vm13 = vcmask 523648
    %14 = vst.msk [vmem:[#allocation0] sm:$0x1] %vm13, %v12
    %s15 = scalar_lea.vmem [#allocation1], 2
    %v16 = vld [vmem:[%s15] sm:$0x1]
    %17 = vrot.lane.b32.xlu0 %v16, 32
    %v18 = vpop.permute.xlu0 %17
    %vm19 = vcmask 392448
    %20 = vst.msk [vmem:[#allocation0] sm:$0x1] %vm19, %v18
    %s21 = scalar_lea.vmem [#allocation1], 1
    %v22 = vld [vmem:[%s21] sm:$0x1]
    %23 = vrot.lane.b32.xlu0 %v22, 16
    %v24 = vpop.permute.xlu0 %23
    %vm25 = vcmask 261248
    %26 = vst.msk [vmem:[#allocation0] sm:$0x1] %vm25, %v24
    %s28 = sshllo.u32 0, 1
    %v30 = vld [vmem:[#allocation0] sm:%s28]
    %s31 = sshllo.u32 0, 1
    %32 = vst [vmem:[%s1] sm:%s31] %v30

// kernel: sconv_transpose1d.1
$region0: #{sconv_transpose1d.1}
  #allocation0 [shape = 'u32[]', space=smem, size = 0x4, offset = 0x4, fixed_abs, tag = 'smem constant byte address 0x4 - core index']
  #allocation1 [shape = 'u32[144,128]{1,0:T(1,128)}', space=vmem, size = 0x12000, scoped, tag = 'internal scratch']
  #allocation2 [shape = 'bf16[1,8,8]{2,1,0:T(8,128)(2,1)}', space=vmem, size = 0x800, scoped, tag = 'scratch operand']
  %s0 = inlined_call_operand.vmem [shape: bf16[2,32,8], index: 0, kind: input, shape index: {}]
  %s1 = inlined_call_operand.vmem [shape: bf16[16,64], index: 1, kind: input, shape index: {}]
  %s2 = inlined_call_operand.vmem [shape: f32[1,64], index: 2, kind: input, shape index: {}]
  %s3 = inlined_call_operand.vmem [shape: f32[2,32,64], index: 3, kind: output, shape index: {}]
  %s4 = sld [smem:[#allocation0]]
  $region49: #{sconv_transpose1d.1} parent=0
    _
  %s6 = ssub.s32 1, %s4
  %s7 = scalar_select 0, %s6, %s4
  loop: start=0, step=1, limit=4
  $region2: #{sconv_transpose1d.1} parent=0 // loop_pre_header
    _
  $region3: #{sconv_transpose1d.1} parent=0 // loop_header
    %s9 = sphi 0, %s13
    %p10 = scmp.ge.s32.totalorder %s9, 4
    %s16 = sphi 0, %s28
    %s17 = sphi 0, %s24
    %s18 = sphi 0, %s16
    %s19 = sphi 0, %s17
    %s20 = sphi 0, %s18
    %s21 = sphi 0, %s19
    %s33 = sphi 0, %s35
    %s36 = sphi 0, %s33
    %s37 = sphi 0, %s36
    %s53 = sphi 0, %s37
    %s57 = sphi 0, %s57
    %s59 = sphi 0, %s57
    %s60 = sphi 0, %s59
    %s74 = sphi 0, %s60
    %s78 = sphi 0, %s78
    %s80 = sphi 0, %s78
    %s81 = sphi 0, %s80
    %s95 = sphi 0, %s81
    %s103 = sphi 0, %s105
    %s106 = sphi 0, %s103
    %s107 = sphi 0, %s106
    %s123 = sphi 0, %s107
  $region4: #{sconv_transpose1d.1} parent=0 // loop_header_branch
    %12 = sbr.rel (%p10) target = $region8
  $region5: #{sconv_transpose1d.1} parent=0 // loop_body
    %s14 = ssub.s32 %s9, 1
    %s15 = ssub.s32 %s9, 2
    %s22 = sadd.s32 1, %s17
    %p23 = scmp.ge.s32.totalorder %s22, 1
    %s24 = scalar_select %p23, 0, %s22
    %s25 = sadd.s32 1, %s16
    %s26 = scalar_select %p23, %s25, %s16
    %p27 = scmp.ge.s32.totalorder %s26, 2
    %s28 = scalar_select %p27, 0, %s26
    %s29 = ssub.s32 %s16, %s28
    %s30 = ssub.s32 %s17, %s24
    %s31 = sor.u32 %s29, %s30
    %p32 = scmp.eq.s32.totalorder %s31, 0
    %s34 = sadd.s32 %s33, 1
    %s35 = scalar_select %p32, %s33, %s34
    %p38 = pneg %p32
    %p39 = scmp.eq.s32.totalorder %s9, 1
    %p40 = por %p38, %p39
    %p41 = scmp.ne.s32.totalorder %s33, %s36
    %p42 = scmp.eq.s32.totalorder %s9, 0
    %p43 = por %p41, %p42
    %p44 = scmp.ne.s32.totalorder %s33, %s36
    %p45 = scmp.eq.s32.totalorder %s14, 1
    %p46 = por %p44, %p45
    %p47 = scmp.ne.s32.totalorder %s36, %s37
    %p48 = scmp.eq.s32.totalorder %s14, 0
    %p49 = por %p47, %p48
    %p50 = scmp.ne.s32.totalorder %s36, %s37
    %p51 = scmp.eq.s32.totalorder %s15, 1
    %p52 = por %p50, %p51
    %p54 = scmp.ne.s32.totalorder %s37, %s53
    %p55 = scmp.eq.s32.totalorder %s15, 0
    %p56 = por %p54, %p55
    %s58 = sadd.s32 %s57, 1
    %p61 = scmp.eq.s32.totalorder %s9, 1
    %p62 = scmp.ne.s32.totalorder %s57, %s59
    %p63 = scmp.eq.s32.totalorder %s9, 0
    %p64 = por %p62, %p63
    %p65 = scmp.ne.s32.totalorder %s57, %s59
    %p66 = scmp.eq.s32.totalorder %s14, 1
    %p67 = por %p65, %p66
    %p68 = scmp.ne.s32.totalorder %s59, %s60
    %p69 = scmp.eq.s32.totalorder %s14, 0
    %p70 = por %p68, %p69
    %p71 = scmp.ne.s32.totalorder %s59, %s60
    %p72 = scmp.eq.s32.totalorder %s15, 1
    %p73 = por %p71, %p72
    %p75 = scmp.ne.s32.totalorder %s60, %s74
    %p76 = scmp.eq.s32.totalorder %s15, 0
    %p77 = por %p75, %p76
    %s79 = sadd.s32 %s78, 1
    %p82 = scmp.eq.s32.totalorder %s9, 1
    %p83 = scmp.ne.s32.totalorder %s78, %s80
    %p84 = scmp.eq.s32.totalorder %s9, 0
    %p85 = por %p83, %p84
    %p86 = scmp.ne.s32.totalorder %s78, %s80
    %p87 = scmp.eq.s32.totalorder %s14, 1
    %p88 = por %p86, %p87
    %p89 = scmp.ne.s32.totalorder %s80, %s81
    %p90 = scmp.eq.s32.totalorder %s14, 0
    %p91 = por %p89, %p90
    %p92 = scmp.ne.s32.totalorder %s80, %s81
    %p93 = scmp.eq.s32.totalorder %s15, 1
    %p94 = por %p92, %p93
    %p96 = scmp.ne.s32.totalorder %s81, %s95
    %p97 = scmp.eq.s32.totalorder %s15, 0
    %p98 = por %p96, %p97
    %s99 = ssub.s32 %s16, %s28
    %s100 = ssub.s32 %s17, %s24
    %s101 = sor.u32 %s99, %s100
    %p102 = scmp.eq.s32.totalorder %s101, 0
    %s104 = sadd.s32 %s103, 1
    %s105 = scalar_select %p102, %s103, %s104
    %p108 = pneg %p102
    %p109 = scmp.eq.s32.totalorder %s9, 1
    %p110 = por %p108, %p109
    %p111 = scmp.ne.s32.totalorder %s103, %s106
    %p112 = scmp.eq.s32.totalorder %s9, 0
    %p113 = por %p111, %p112
    %p114 = scmp.ne.s32.totalorder %s103, %s106
    %p115 = scmp.eq.s32.totalorder %s14, 1
    %p116 = por %p114, %p115
    %p117 = scmp.ne.s32.totalorder %s106, %s107
    %p118 = scmp.eq.s32.totalorder %s14, 0
    %p119 = por %p117, %p118
    %p120 = scmp.ne.s32.totalorder %s106, %s107
    %p121 = scmp.eq.s32.totalorder %s15, 1
    %p122 = por %p120, %p121
    %p124 = scmp.ne.s32.totalorder %s107, %s123
    %p125 = scmp.eq.s32.totalorder %s15, 0
    %p126 = por %p124, %p125
    %p127 = scmp.le.s32.totalorder 1, %s9
    %p128 = scmp.lt.s32.totalorder %s9, 3
    %p129 = pnand %p127, %p128
    %p130 = pneg %p129
    // Predicated region
    $region9: #{sconv_transpose1d.1} parent=5 // pred_check
      _
    $region10: #{sconv_transpose1d.1} parent=5 // pred_check_branch
      %132 = sbr.rel (%p129) target = $region12
    $region11: #{sconv_transpose1d.1} parent=5 // pred_region
      %s133 = ssub.s32 %s9, 1
      // Predicated region
      $region13: #{sconv_transpose1d.1} parent=11 // pred_check
        %p134 = pneg %p70
      $region14: #{sconv_transpose1d.1} parent=11 // pred_check_branch
        %136 = sbr.rel (%p134) target = $region16
      $region15: #{sconv_transpose1d.1} parent=11 // pred_region
        _
      $region16: #{sconv_transpose1d.1} parent=11 // pred_fallthru
        _
      // Predicated region
      $region17: #{sconv_transpose1d.1} parent=11 // pred_check
        %p137 = pneg %p91
      $region18: #{sconv_transpose1d.1} parent=11 // pred_check_branch
        %139 = sbr.rel (%p137) target = $region20
      $region19: #{sconv_transpose1d.1} parent=11 // pred_region
        _
      $region20: #{sconv_transpose1d.1} parent=11 // pred_fallthru
        _
    $region12: #{sconv_transpose1d.1} parent=5 // pred_fallthru
      _
    %p140 = scmp.lt.s32.totalorder %s9, 2
    // Predicated region
    $region21: #{sconv_transpose1d.1} parent=5 // pred_check
      %p141 = pneg %p140
    $region22: #{sconv_transpose1d.1} parent=5 // pred_check_branch
      %143 = sbr.rel (%p141) target = $region24
    $region23: #{sconv_transpose1d.1} parent=5 // pred_region
      // Predicated region
      $region25: #{sconv_transpose1d.1} parent=23 // pred_check
        %p144 = pneg %p43
      $region26: #{sconv_transpose1d.1} parent=23 // pred_check_branch
        %146 = sbr.rel (%p144) target = $region28
      $region27: #{sconv_transpose1d.1} parent=23 // pred_region
        %s147 = smul.u32 4, %s17
        %p148 = scmp.lt.s32.totalorder %s16, 1
        %s149 = scalar_select %p148, %s16, 1
        %p150 = scmp.lt.s32.totalorder %s147, 3
        %s151 = scalar_select %p150, %s147, 3
        %s152 = smul.addr %s149, 4
        %s153 = sadd.s32 %s151, %s152
        %s154 = smul.addr %s153, 4
        %s155 = scalar_lea.vmem %s0, %s154
        %s156 = smul.u32 4, %s17
      $region28: #{sconv_transpose1d.1} parent=23 // pred_fallthru
        _
    $region24: #{sconv_transpose1d.1} parent=5 // pred_fallthru
      _
    %p157 = scmp.le.s32.totalorder 1, %s9
    %p158 = scmp.lt.s32.totalorder %s9, 3
    %p159 = pnand %p157, %p158
    %p160 = pneg %p159
    // Predicated region
    $region29: #{sconv_transpose1d.1} parent=5 // pred_check
      _
    $region30: #{sconv_transpose1d.1} parent=5 // pred_check_branch
      %162 = sbr.rel (%p159) target = $region32
    $region31: #{sconv_transpose1d.1} parent=5 // pred_region
      %s163 = ssub.s32 %s9, 1
      %s164 = smul.u32 4, %s19
      %p165 = scmp.lt.s32.totalorder %s18, 1
      %s166 = scalar_select %p165, %s18, 1
      %p167 = scmp.lt.s32.totalorder %s164, 3
      %s168 = scalar_select %p167, %s164, 3
      %s169 = smul.addr %s166, 4
      %s170 = sadd.s32 %s168, %s169
      %s171 = smul.addr %s170, 4
      %s172 = scalar_lea.vmem %s0, %s171
      %p173 = pneg %p49
      %p174 = pneg %p46
      %p175 = pneg %p70
      %p176 = pneg %p67
      %p177 = pneg %p91
      %p178 = pneg %p88
      %p179 = pneg %p119
      %p180 = pneg %p116
      %s181 = smul.u32 4, %s19
      %p182 = scmp.lt.s32.totalorder %s18, 1
      %s183 = scalar_select %p182, %s18, 1
      %p184 = scmp.lt.s32.totalorder %s181, 3
      %s185 = scalar_select %p184, %s181, 3
      %s186 = smul.addr %s183, 4
      %s187 = sadd.s32 %s185, %s186
      %s188 = smul.addr %s187, 8
      %s189 = scalar_lea.vmem %s3, %s188
      %s190 = smul.u32 4, %s19
      %p191 = scmp.lt.s32.totalorder %s18, 1
      %s192 = scalar_select %p191, %s18, 1
      %p193 = scmp.lt.s32.totalorder %s190, 3
      %s194 = scalar_select %p193, %s190, 3
      %s195 = smul.addr %s192, 4
      %s196 = sadd.s32 %s194, %s195
      %s197 = smul.addr %s196, 4
      %s198 = scalar_lea.vmem %s0, %s197
      %s199 = smul.u32 4, %s19
      %s200 = smul.u32 4, %s19
      %p201 = scmp.lt.s32.totalorder %s18, 1
      %s202 = scalar_select %p201, %s18, 1
      %p203 = scmp.lt.s32.totalorder %s200, 3
      %s204 = scalar_select %p203, %s200, 3
      %s205 = smul.addr %s202, 4
      %s206 = sadd.s32 %s204, %s205
      %s207 = smul.addr %s206, 8
      %s208 = scalar_lea.vmem %s3, %s207
      %s209 = smul.u32 4, %s19
      %p211 = scmp.eq.s32.totalorder %s19, 0
      // Predicated region
      $region33: #{sconv_transpose1d.1} parent=31 // pred_check
        %p212 = pneg %p211
      $region34: #{sconv_transpose1d.1} parent=31 // pred_check_branch
        %214 = sbr.rel (%p212) target = $region36
      $region35: #{sconv_transpose1d.1} parent=31 // pred_region
        %vm215 = vcmask 60416
        %216 = vst.msk [vmem:[#allocation2] sm:$0xf] %vm215, 0
      $region36: #{sconv_transpose1d.1} parent=31 // pred_fallthru
        _
      %v217 = vld [vmem:[%s198] sm:$0xf]
      %v218 = vld [vmem:[%s198 + $0x4] sm:$0xf]
      %v219 = vld [vmem:[%s198 + $0x8] sm:$0xf]
      %v220 = vld [vmem:[%s198 + $0xc] sm:$0xf]
      %v221 = vld [vmem:[#allocation2] sm:$0xf]
      %v226 = vunpack.c.l.b16 %v217
      %v227 = vunpack.c.l.b16 %v218
      %v228 = vunpack.c.l.b16 %v219
      %v229 = vunpack.c.l.b16 %v220
      %v230 = vpack.c.b16 %v226, %v226
      %v231 = vpack.c.b16 %v228, %v227
      %v232 = vpack.c.b16 %v229, %v229
      %vm234 = vcmask 1043456
      %v237 = vsel %vm234, %v221, %v230
      %v238 = vpack.c.b16 %v227, %v226
      %v239 = vpack.c.b16 %v229, %v228
      %vm240 = vsmask.f32 4352
      %v241 = vshrl.u32 %v237, 16
      %v243 = vrot.slane %v241, 3
      %v244 = vshll.u32 %v237, 16
      %v246 = vrot.slane %v244, 4
      %v247 = vor.u32 %v243, %v246
      %v249 = vshrl.u32 %v231, 16
      %v251 = vrot.slane %v249, 3
      %v252 = vshll.u32 %v231, 16
      %v254 = vrot.slane %v252, 4
      %v255 = vor.u32 %v251, %v254
      %v256 = vsel %vm240, %v247, %v255
      %v258 = vshrl.u32 %v232, 16
      %v260 = vrot.slane %v258, 3
      %v261 = vshll.u32 %v232, 16
      %v263 = vrot.slane %v261, 4
      %v264 = vor.u32 %v260, %v263
      %v265 = vsel %vm240, %v255, %v264
      %266 = vrot.lane.b32.xlu0 %v256, 8
      %v267 = vpop.permute.xlu0 %266
      %268 = vrot.lane.b32.xlu0 %v265, 8
      %v269 = vpop.permute.xlu0 %268
      %vm270 = vcmask 64512
      %v273 = vsel %vm270, %v238, %v267
      %v276 = vsel %vm270, %v239, %v269
      %v277 = vld [vmem:[%s1] sm:$0xf]
      %v278 = vld [vmem:[%s1 + $0x4] sm:$0xf]
      %v279 = vld [vmem:[%s2] sm:$0x1]
      %v281 = vlaneseq
      %v282 = vshrl.u32 %v281, 7
      %v283 = vsub.s32 0, %v282
      %v284 = vrot.slane %v279, %v283
      %v288 = vunpack.c.l.b16 %v277
      %v289 = vunpack.c.l.b16 %v278
      %v290 = vpack.c.b16 %v289, %v288
      %vm292 = vcmask 130048
      %v293 = vsel %vm292, %v273, 0
      %v295 = vsel %vm292, %v276, 0
      %297 = vmatprep.subr.bf16.mxu0 0
      %298 = vmatpush1.bf16.msra.mxu0 %v290
      %299 = vmatprep.subr.bf16.mxu0 0
      %300 = vmatpush1.bf16.msra.mxu0 0
      %301 = vmatprep.subr.bf16.mxu0 0
      %302 = vmatpush1.bf16.msra.mxu0 0
      %303 = vmatprep.subr.bf16.mxu0 0
      %304 = vmatpush1.bf16.msra.mxu0 0
      %305 = vmatprep.subr.bf16.mxu0 0
      %306 = vmatpush1.bf16.msra.mxu0 0
      %307 = vmatprep.subr.bf16.mxu0 0
      %308 = vmatpush1.bf16.msra.mxu0 0
      %309 = vmatprep.subr.bf16.mxu0 0
      %310 = vmatpush1.bf16.msra.mxu0 0
      %311 = vmatprep.subr.bf16.mxu0 0
      %312 = vmatpush1.bf16.msra.mxu0 0
      %313 = vmatprep.subr.bf16.mxu0 0
      %314 = vmatpush1.bf16.msra.mxu0 0
      %315 = vmatprep.subr.bf16.mxu0 0
      %316 = vmatpush1.bf16.msra.mxu0 0
      %317 = vmatprep.subr.bf16.mxu0 0
      %318 = vmatpush1.bf16.msra.mxu0 0
      %319 = vmatprep.subr.bf16.mxu0 0
      %320 = vmatpush1.bf16.msra.mxu0 0
      %321 = vmatprep.subr.bf16.mxu0 0
      %322 = vmatpush1.bf16.msra.mxu0 0
      %323 = vmatprep.subr.bf16.mxu0 0
      %324 = vmatpush1.bf16.msra.mxu0 0
      %325 = vmatprep.subr.bf16.mxu0 0
      %326 = vmatpush1.bf16.msra.mxu0 0
      %327 = vmatprep.subr.bf16.mxu0 0
      %328 = vmatpush1.bf16.msra.mxu0 0
      %329 = vmatprep.mubr.bf16.mxu0 0
      %330 = vmatmul.mubr.bf16.gmra.mrb[0].mxu0 %v293
      %v331 = vpop.f32.mrb[0].mxu0
      %v332 = vadd.f32 %v284, %v331
      %v333 = vpop.f32.mrb[0].mxu0
      %v334 = vpop.f32.mrb[0].mxu0
      %v335 = vadd.f32 %v284, %v334
      %v336 = vpop.f32.mrb[0].mxu0
      %337 = vmatprep.mubr.bf16.mxu0 0
      %338 = vmatmul.mubr.bf16.gmra.mrb[0].mxu0 %v295
      %v339 = vpop.f32.mrb[0].mxu0
      %v340 = vadd.f32 %v284, %v339
      %v341 = vpop.f32.mrb[0].mxu0
      %v342 = vpop.f32.mrb[0].mxu0
      %v343 = vadd.f32 %v284, %v342
      %v344 = vpop.f32.mrb[0].mxu0
      %345 = vdwg.mxu0
      %vm346 = vcmask 523264
      %347 = vst.msk [vmem:[%s208] sm:$0xff] %vm346, %v332
      %348 = vst.msk [vmem:[%s208 + $0x8] sm:$0xff] %vm346, %v335
      %349 = vst.msk [vmem:[%s208 + $0x10] sm:$0xff] %vm346, %v340
      %350 = vst.msk [vmem:[%s208 + $0x18] sm:$0xff] %vm346, %v343
      %vm351 = vcmask 60416
      %352 = vst.msk [vmem:[#allocation2] sm:$0xf] %vm351, %v232
      %s353 = smul.u32 4, %s19
      %p354 = scmp.lt.s32.totalorder %s18, 1
      %s355 = scalar_select %p354, %s18, 1
      %p356 = scmp.lt.s32.totalorder %s353, 3
      %s357 = scalar_select %p356, %s353, 3
      %s358 = smul.addr %s355, 4
      %s359 = sadd.s32 %s357, %s358
      %s360 = smul.addr %s359, 8
      %s361 = scalar_lea.vmem %s3, %s360
      // Predicated region
      $region37: #{sconv_transpose1d.1} parent=31 // pred_check
        %p362 = pneg %p116
      $region38: #{sconv_transpose1d.1} parent=31 // pred_check_branch
        %364 = sbr.rel (%p362) target = $region40
      $region39: #{sconv_transpose1d.1} parent=31 // pred_region
        %s365 = smul.u32 4, %s19
      $region40: #{sconv_transpose1d.1} parent=31 // pred_fallthru
        _
    $region32: #{sconv_transpose1d.1} parent=5 // pred_fallthru
      _
    %p366 = scmp.le.s32.totalorder 2, %s9
    // Predicated region
    $region41: #{sconv_transpose1d.1} parent=5 // pred_check
      %p367 = pneg %p366
    $region42: #{sconv_transpose1d.1} parent=5 // pred_check_branch
      %369 = sbr.rel (%p367) target = $region44
    $region43: #{sconv_transpose1d.1} parent=5 // pred_region
      %s370 = ssub.s32 %s9, 2
      // Predicated region
      $region45: #{sconv_transpose1d.1} parent=43 // pred_check
        %p371 = pneg %p122
      $region46: #{sconv_transpose1d.1} parent=43 // pred_check_branch
        %373 = sbr.rel (%p371) target = $region48
      $region47: #{sconv_transpose1d.1} parent=43 // pred_region
        %s374 = smul.u32 4, %s21
        %p375 = scmp.lt.s32.totalorder %s20, 1
        %s376 = scalar_select %p375, %s20, 1
        %p377 = scmp.lt.s32.totalorder %s374, 3
        %s378 = scalar_select %p377, %s374, 3
        %s379 = smul.addr %s376, 4
        %s380 = sadd.s32 %s378, %s379
        %s381 = smul.addr %s380, 8
        %s382 = scalar_lea.vmem %s3, %s381
      $region48: #{sconv_transpose1d.1} parent=43 // pred_fallthru
        _
    $region44: #{sconv_transpose1d.1} parent=5 // pred_fallthru
      _
  $region6: #{sconv_transpose1d.1} parent=0 // loop_footer
    %s13 = sadd.s32 1, %s9
  $region7: #{sconv_transpose1d.1} parent=0 // loop_footer_branch
    %8 = sbr.rel target = $region3
  $region8: #{sconv_transpose1d.1} parent=0 // loop_exit
    _

</llo_original>
